<compile_context>
chip_gen: v7x
topology: tpu7x:2x2x1
jax: 0.10.0
libtpu: 0.0.40
codegen_flags: <defaults>
</compile_context>

<pallas_src>
import math

import jax
import jax.numpy as jnp
from jax import lax
from jax.experimental import pallas as pl
from jax.experimental.pallas import tpu as pltpu

C_MID = 64   # conv1 out channels
C_OUT = 32   # conv2 out channels
K_H = 3      # conv2 kernel height (padding 1 -> 'same' along H)


def _make_kernel(b_blk, w_dim, p_dim, halo, out_dtype):
    """Kernel body for a (b_blk, Cin, P) input block.

    w_dim : image width W (one H-row shift == W lanes of the flattened P axis)
    halo  : left/right zero-halo width of the activation scratch (>= W, multiple
            of 128 so the per-image activation store is lane-aligned)
    """

    def kernel(x_ref, w1_ref, b1_ref, w2_ref, b2_ref, o_ref, ypad_ref):
        # x_ref   : (b_blk, Cin, P)      f32   NCHW with spatial flattened
        # w1_ref  : (64, Cin)            bf16  conv1 weight
        # b1_ref  : (64, 1)              f32
        # w2_ref  : (3, 32, 64)          bf16  conv2 weight, one (out,in) per H tap
        # b2_ref  : (32, 1)              f32
        # o_ref   : (b_blk, 32, P)       out_dtype  channel-first, lane-dense stores
        # ypad_ref: (64, P + 2*halo)     bf16  halo-padded conv1 activation scratch

        # ---- loop-invariant loads / fills (hoisted out of the batch loop) -----
        w1 = w1_ref[...]              # (64, Cin)
        b1 = b1_ref[...]              # (64, 1)
        w2_up = w2_ref[0]             # (32, 64) -> multiplies y[h-1]
        w2_ct = w2_ref[1]             # (32, 64) -> multiplies y[h]
        w2_dn = w2_ref[2]             # (32, 64) -> multiplies y[h+1]
        b2 = b2_ref[...]              # (32, 1)

        # Zero the H halos once per grid step (scratch is uninitialized; the
        # interior is overwritten per image so the halos stay zero afterwards).
        halo_zeros = jnp.zeros((C_MID, halo), jnp.bfloat16)
        ypad_ref[:, :halo] = halo_zeros
        ypad_ref[:, halo + p_dim:] = halo_zeros

        def one_image(b):
            xb = x_ref[b].astype(jnp.bfloat16)                      # (Cin, P)

            # conv1 (1x1) + bias + ReLU: plain (64,Cin)@(Cin,P) bf16 MXU matmul,
            # channel-first / lane-dense, f32 accumulation.
            y = jnp.dot(w1, xb, preferred_element_type=jnp.float32)  # (64, P)
            y = jnp.maximum(y + b1, 0.0).astype(jnp.bfloat16)

            # Stage y into the halo-padded scratch (lane-aligned store at `halo`)
            # so the conv2 height taps are plain static lane-window reads.
            ypad_ref[:, halo:halo + p_dim] = y

            # conv2 (3,1), padding (1,0): three (32,64)@(64,P) bf16 matmuls in a
            # single f32 accumulation chain; center tap fed straight from regs.
            acc = jnp.dot(w2_up, ypad_ref[:, halo - w_dim:halo - w_dim + p_dim],
                          preferred_element_type=jnp.float32)        # uses y[h-1]
            acc = acc + jnp.dot(w2_ct, y, preferred_element_type=jnp.float32)
            acc = acc + jnp.dot(w2_dn, ypad_ref[:, halo + w_dim:halo + w_dim + p_dim],
                                preferred_element_type=jnp.float32)   # uses y[h+1]

            o_ref[b] = (acc + b2).astype(out_dtype)                  # (32, P)

        if b_blk == 1:
            one_image(0)
        else:
            # Unrolled fori_loop keeps per-image live ranges bounded (vs a raw
            # Python loop) while still giving the scheduler full visibility.
            def body(b, carry):
                one_image(b)
                return carry
            lax.fori_loop(0, b_blk, body, 0, unroll=True)

    return kernel


def _pick_batch_block(n, c_in, p, halo, out_bytes, max_block=8, vmem_budget=20 << 20):
    """Pick images-per-grid-step.

    Caps the double-buffered block footprint against a conservative VMEM budget
    (v7x has only 64 MiB physical VMEM / 32 MiB default scoped) and prefers an
    EVEN number of grid steps so both v7x TensorCores get work under
    dimension_semantics=('parallel',).
    """
    cin_pad = ((c_in + 7) // 8) * 8
    per_img = 2 * (cin_pad * p * 4 + C_OUT * p * out_bytes)            # dbl-buffered blocks
    fixed = C_MID * (p + 2 * halo) * 2 + C_MID * p * 6 + C_OUT * p * 4  # scratch + temps
    avail = max(vmem_budget - fixed, per_img)
    cap = int(max(1, min(max_block, avail // per_img)))

    divisors = [b for b in range(1, min(n, cap) + 1) if n % b == 0]
    even_steps = [b for b in divisors if (n // b) % 2 == 0]
    if even_steps:
        return max(even_steps)
    multi_steps = [b for b in divisors if n // b >= 2]
    if multi_steps:
        return max(multi_steps)
    return max(divisors)


def hcn_point_forward(x_nchw, w1, b1, w2, b2, *, out_dtype=jnp.float32, max_batch_block=8):
    """x_nchw: (N, Cin, H, W). Returns (N, 32, H, W) in `out_dtype`.

    out_dtype=jnp.bfloat16 halves the dominant output writeback / VMEM footprint
    if the consumer (MMTM gating) tolerates it.
    """
    n, c_in, h, w = x_nchw.shape
    p = h * w
    # NOTE: if H*W is not a multiple of 128 the output stores become lane-masked
    # (a perf cliff, not a numerics bug); pad spatially in the caller if needed.

    halo = max(128, ((w + 127) // 128) * 128)    # >= W, multiple of 128

    x2 = x_nchw.reshape(n, c_in, p)                           # reshape only, no transpose
    w1m = w1[:, :, 0, 0].astype(jnp.bfloat16)                 # (64, Cin)
    b1r = b1.reshape(C_MID, 1).astype(jnp.float32)
    # (32, 64, 3, 1) -> (3, 32, 64): one (out, in) matrix per height tap, bf16 for MXU.
    w2t = jnp.transpose(w2[:, :, :, 0], (2, 0, 1)).astype(jnp.bfloat16)
    b2c = b2.reshape(C_OUT, 1).astype(jnp.float32)

    out_bytes = jnp.dtype(out_dtype).itemsize
    b_blk = _pick_batch_block(n, c_in, p, halo, out_bytes, max_batch_block)
    grid = (n // b_blk,)

    out2 = pl.pallas_call(
        _make_kernel(b_blk, w, p, halo, out_dtype),
        out_shape=jax.ShapeDtypeStruct((n, C_OUT, p), out_dtype),
        grid_spec=pltpu.PrefetchScalarGridSpec(
            num_scalar_prefetch=0,
            grid=grid,
            in_specs=[
                pl.BlockSpec((b_blk, c_in, p), lambda i: (i, 0, 0)),
                pl.BlockSpec((C_MID, c_in), lambda i: (0, 0)),
                pl.BlockSpec((C_MID, 1), lambda i: (0, 0)),
                pl.BlockSpec((K_H, C_OUT, C_MID), lambda i: (0, 0, 0)),
                pl.BlockSpec((C_OUT, 1), lambda i: (0, 0)),
            ],
            out_specs=pl.BlockSpec((b_blk, C_OUT, p), lambda i: (i, 0, 0)),
            scratch_shapes=[pltpu.VMEM((C_MID, p + 2 * halo), jnp.bfloat16)],
        ),
        compiler_params=pltpu.CompilerParams(
            dimension_semantics=("parallel",),
            vmem_limit_bytes=32 * 1024 * 1024),
    )(x2, w1m, b1r, w2t, b2c)

    return out2.reshape(n, C_OUT, h, w)                       # reshape only, no transpose


def _init_params(key, in_channel):
    """xavier_uniform weights (as in xavier_init(distribution='uniform')), zero biases."""
    k1, k2 = jax.random.split(key)
    # conv1: weight (64, Cin, 1, 1); fan_in=Cin, fan_out=64
    bound1 = math.sqrt(6.0 / (in_channel + C_MID))
    w1 = jax.random.uniform(k1, (C_MID, in_channel, 1, 1), jnp.float32, -bound1, bound1)
    b1 = jnp.zeros((C_MID,), jnp.float32)
    # conv2: weight (32, 64, 3, 1); fan_in=64*3, fan_out=32*3
    bound2 = math.sqrt(6.0 / (C_MID * K_H + C_OUT * K_H))
    w2 = jax.random.uniform(k2, (C_OUT, C_MID, K_H, 1), jnp.float32, -bound2, bound2)
    b2 = jnp.zeros((C_OUT,), jnp.float32)
    return w1, b1, w2, b2


def _reference_forward(x, w1, b1, w2, b2):
    dn = ("NCHW", "OIHW", "NCHW")
    y = lax.conv_general_dilated(x, w1, (1, 1), "VALID", dimension_numbers=dn)
    y = y + b1[None, :, None, None]
    y = jnp.maximum(y, 0.0)
    o = lax.conv_general_dilated(y, w2, (1, 1), ((1, 1), (0, 0)), dimension_numbers=dn)
    return o + b2[None, :, None, None]


if __name__ == "__main__":
    key = jax.random.PRNGKey(0)
    kx, kp = jax.random.split(key)

    N, Cin, H, W = 2, 4, 16, 16
    x = jax.random.normal(kx, (N, Cin, H, W), jnp.float32)
    w1, b1, w2, b2 = _init_params(kp, Cin)

    out = hcn_point_forward(x, w1, b1, w2, b2)
    out = jax.block_until_ready(out)

    ref = jax.block_until_ready(_reference_forward(x, w1, b1, w2, b2))
    assert out.shape == (N, C_OUT, H, W), out.shape
    # Both convs now run with bf16 MXU inputs (f32 accumulation) -> loosened tolerance.
    max_err = float(jnp.max(jnp.abs(out - ref)))
    assert jnp.allclose(out, ref, atol=5e-2, rtol=5e-2), max_err

    print("KERNEL_OK")
</pallas_src>

<mosaic_0001>
module attributes {stable_mosaic.version = 11 : i64} {
  func.func @kernel(%arg0: i32, %arg1: memref<1x4x256xf32, #tpu.memory_space<vmem>>, %arg2: memref<64x4xbf16, #tpu.memory_space<vmem>>, %arg3: memref<64x1xf32, #tpu.memory_space<vmem>>, %arg4: memref<3x32x64xbf16, #tpu.memory_space<vmem>>, %arg5: memref<32x1xf32, #tpu.memory_space<vmem>>, %arg6: memref<1x32x256xf32, #tpu.memory_space<vmem>>, %arg7: memref<64x512xbf16, #tpu.memory_space<vmem>>) attributes {dimension_semantics = [#tpu.dimension_semantics<parallel>], iteration_bounds = array<i64: 2>, scalar_prefetch = 0 : i64, scratch_operands = 1 : i64, tpu.core_type = #tpu.core_type<tc>, window_params = [{transform_indices = @transform_0, window_bounds = array<i64: 1, 4, 256>}, {pipeline_mode = #tpu.pipeline_mode<synchronous>, transform_indices = @transform_1, window_bounds = array<i64: 64, 4>}, {pipeline_mode = #tpu.pipeline_mode<synchronous>, transform_indices = @transform_2, window_bounds = array<i64: 64, 1>}, {pipeline_mode = #tpu.pipeline_mode<synchronous>, transform_indices = @transform_3, window_bounds = array<i64: 3, 32, 64>}, {pipeline_mode = #tpu.pipeline_mode<synchronous>, transform_indices = @transform_4, window_bounds = array<i64: 32, 1>}, {transform_indices = @transform_5, window_bounds = array<i64: 1, 32, 256>}]} {
    %c0 = arith.constant 0 : index
    %c0_0 = arith.constant 0 : index
    %0 = vector.load %arg2[%c0, %c0_0] : memref<64x4xbf16, #tpu.memory_space<vmem>>, vector<64x4xbf16>
    %c0_1 = arith.constant 0 : index
    %c0_2 = arith.constant 0 : index
    %1 = vector.load %arg3[%c0_1, %c0_2] : memref<64x1xf32, #tpu.memory_space<vmem>>, vector<64x1xf32>
    %c0_3 = arith.constant 0 : index
    %c0_4 = arith.constant 0 : index
    %c0_5 = arith.constant 0 : index
    %2 = vector.load %arg4[%c0_3, %c0_4, %c0_5] : memref<3x32x64xbf16, #tpu.memory_space<vmem>>, vector<1x32x64xbf16>
    %3 = vector.shape_cast %2 : vector<1x32x64xbf16> to vector<32x64xbf16>
    %c1 = arith.constant 1 : index
    %c0_6 = arith.constant 0 : index
    %c0_7 = arith.constant 0 : index
    %4 = vector.load %arg4[%c1, %c0_6, %c0_7] : memref<3x32x64xbf16, #tpu.memory_space<vmem>>, vector<1x32x64xbf16>
    %5 = vector.shape_cast %4 : vector<1x32x64xbf16> to vector<32x64xbf16>
    %c2 = arith.constant 2 : index
    %c0_8 = arith.constant 0 : index
    %c0_9 = arith.constant 0 : index
    %6 = vector.load %arg4[%c2, %c0_8, %c0_9] : memref<3x32x64xbf16, #tpu.memory_space<vmem>>, vector<1x32x64xbf16>
    %7 = vector.shape_cast %6 : vector<1x32x64xbf16> to vector<32x64xbf16>
    %c0_10 = arith.constant 0 : index
    %c0_11 = arith.constant 0 : index
    %8 = vector.load %arg5[%c0_10, %c0_11] : memref<32x1xf32, #tpu.memory_space<vmem>>, vector<32x1xf32>
    %cst = arith.constant 0.000000e+00 : bf16
    %9 = vector.broadcast %cst : bf16 to vector<64x128xbf16>
    %c0_12 = arith.constant 0 : index
    %c0_13 = arith.constant 0 : index
    %10 = vector.load %arg7[%c0_12, %c0_13] : memref<64x512xbf16, #tpu.memory_space<vmem>>, vector<64x128xbf16>
    tpu.vector_store %arg7[%c0_12, %c0_13], %9 {strides = array<i32>} : memref<64x512xbf16, #tpu.memory_space<vmem>>, vector<64x128xbf16>,
    %c0_14 = arith.constant 0 : index
    %c384 = arith.constant 384 : index
    %11 = vector.load %arg7[%c0_14, %c384] : memref<64x512xbf16, #tpu.memory_space<vmem>>, vector<64x128xbf16>
    tpu.vector_store %arg7[%c0_14, %c384], %9 {strides = array<i32>} : memref<64x512xbf16, #tpu.memory_space<vmem>>, vector<64x128xbf16>,
    %c0_15 = arith.constant 0 : index
    %c0_16 = arith.constant 0 : index
    %c0_17 = arith.constant 0 : index
    %12 = vector.load %arg1[%c0_15, %c0_16, %c0_17] : memref<1x4x256xf32, #tpu.memory_space<vmem>>, vector<1x4x256xf32>
    %13 = vector.shape_cast %12 : vector<1x4x256xf32> to vector<4x256xf32>
    %14 = arith.truncf %13 : vector<4x256xf32> to vector<4x256xbf16>
    %cst_18 = arith.constant dense<0.000000e+00> : vector<64x256xf32>
    %15 = tpu.matmul %0, %14, %cst_18 {dimension_numbers = #tpu.dot_dimension_numbers<[1], [0], [0], [1], [0, 0, 1, 1], [], []>} : vector<64x4xbf16>, vector<4x256xbf16>, vector<64x256xf32> -> vector<64x256xf32>
    %16 = vector.broadcast %1 : vector<64x1xf32> to vector<64x256xf32>
    %17 = arith.addf %15, %16 : vector<64x256xf32>
    %cst_19 = arith.constant 0.000000e+00 : f32
    %18 = vector.broadcast %cst_19 : f32 to vector<64x256xf32>
    %19 = arith.maximumf %17, %18 : vector<64x256xf32>
    %20 = arith.truncf %19 : vector<64x256xf32> to vector<64x256xbf16>
    %c0_20 = arith.constant 0 : index
    %c128 = arith.constant 128 : index
    %21 = vector.load %arg7[%c0_20, %c128] : memref<64x512xbf16, #tpu.memory_space<vmem>>, vector<64x256xbf16>
    tpu.vector_store %arg7[%c0_20, %c128], %20 {strides = array<i32>} : memref<64x512xbf16, #tpu.memory_space<vmem>>, vector<64x256xbf16>,
    %c0_21 = arith.constant 0 : index
    %c112 = arith.constant 112 : index
    %22 = vector.load %arg7[%c0_21, %c112] : memref<64x512xbf16, #tpu.memory_space<vmem>>, vector<64x256xbf16>
    %cst_22 = arith.constant dense<0.000000e+00> : vector<32x256xf32>
    %23 = tpu.matmul %3, %22, %cst_22 {dimension_numbers = #tpu.dot_dimension_numbers<[1], [0], [0], [1], [0, 0, 1, 1], [], []>} : vector<32x64xbf16>, vector<64x256xbf16>, vector<32x256xf32> -> vector<32x256xf32>
    %cst_23 = arith.constant dense<0.000000e+00> : vector<32x256xf32>
    %24 = tpu.matmul %5, %20, %cst_23 {dimension_numbers = #tpu.dot_dimension_numbers<[1], [0], [0], [1], [0, 0, 1, 1], [], []>} : vector<32x64xbf16>, vector<64x256xbf16>, vector<32x256xf32> -> vector<32x256xf32>
    %25 = arith.addf %23, %24 : vector<32x256xf32>
    %c0_24 = arith.constant 0 : index
    %c144 = arith.constant 144 : index
    %26 = vector.load %arg7[%c0_24, %c144] : memref<64x512xbf16, #tpu.memory_space<vmem>>, vector<64x256xbf16>
    %cst_25 = arith.constant dense<0.000000e+00> : vector<32x256xf32>
    %27 = tpu.matmul %7, %26, %cst_25 {dimension_numbers = #tpu.dot_dimension_numbers<[1], [0], [0], [1], [0, 0, 1, 1], [], []>} : vector<32x64xbf16>, vector<64x256xbf16>, vector<32x256xf32> -> vector<32x256xf32>
    %28 = arith.addf %25, %27 : vector<32x256xf32>
    %29 = vector.broadcast %8 : vector<32x1xf32> to vector<32x256xf32>
    %30 = arith.addf %28, %29 : vector<32x256xf32>
    %c0_26 = arith.constant 0 : index
    %c0_27 = arith.constant 0 : index
    %c0_28 = arith.constant 0 : index
    %31 = vector.load %arg6[%c0_26, %c0_27, %c0_28] : memref<1x32x256xf32, #tpu.memory_space<vmem>>, vector<1x32x256xf32>
    %32 = vector.shape_cast %31 : vector<1x32x256xf32> to vector<32x256xf32>
    %33 = vector.shape_cast %30 : vector<32x256xf32> to vector<1x32x256xf32>
    tpu.vector_store %arg6[%c0_26, %c0_27, %c0_28], %33 {strides = array<i32>} : memref<1x32x256xf32, #tpu.memory_space<vmem>>, vector<1x32x256xf32>,
    return
  }
  func.func @transform_0(%arg0: i32) -> (i32, i32, i32) {
    %c0_i32 = arith.constant 0 : i32
    %c0_i32_0 = arith.constant 0 : i32
    %c0_i32_1 = arith.constant 0 : i32
    return %arg0, %c0_i32, %c0_i32_0 : i32, i32, i32
  }
  func.func @transform_1(%arg0: i32) -> (i32, i32) {
    %c0_i32 = arith.constant 0 : i32
    %c0_i32_0 = arith.constant 0 : i32
    %c0_i32_1 = arith.constant 0 : i32
    return %c0_i32, %c0_i32_0 : i32, i32
  }
  func.func @transform_2(%arg0: i32) -> (i32, i32) {
    %c0_i32 = arith.constant 0 : i32
    %c0_i32_0 = arith.constant 0 : i32
    %c0_i32_1 = arith.constant 0 : i32
    return %c0_i32, %c0_i32_0 : i32, i32
  }
  func.func @transform_3(%arg0: i32) -> (i32, i32, i32) {
    %c0_i32 = arith.constant 0 : i32
    %c0_i32_0 = arith.constant 0 : i32
    %c0_i32_1 = arith.constant 0 : i32
    %c0_i32_2 = arith.constant 0 : i32
    return %c0_i32, %c0_i32_0, %c0_i32_1 : i32, i32, i32
  }
  func.func @transform_4(%arg0: i32) -> (i32, i32) {
    %c0_i32 = arith.constant 0 : i32
    %c0_i32_0 = arith.constant 0 : i32
    %c0_i32_1 = arith.constant 0 : i32
    return %c0_i32, %c0_i32_0 : i32, i32
  }
  func.func @transform_5(%arg0: i32) -> (i32, i32, i32) {
    %c0_i32 = arith.constant 0 : i32
    %c0_i32_0 = arith.constant 0 : i32
    %c0_i32_1 = arith.constant 0 : i32
    return %arg0, %c0_i32, %c0_i32_0 : i32, i32, i32
  }
}

</mosaic_0001>

<llo_original>
// kernel: tpu_custom_call.1
$region0: #{tpu_custom_call.1}
  #allocation0 [shape = 'u32[]', space=smem, size = 0x4, offset = 0x4, fixed_abs, tag = 'smem constant byte address 0x4 - core index']
  #allocation1 [shape = 'u32[144,128]{1,0:T(1,128)}', space=vmem, size = 0x12000, scoped, tag = 'internal scratch']
  #allocation2 [shape = 'bf16[64,512]{1,0:T(16,128)(2,1)}', space=vmem, size = 0x10000, scoped, tag = 'scratch operand']
  %s0 = inlined_call_operand.vmem [shape: f32[2,4,256], index: 0, kind: input, shape index: {}]
  %s1 = inlined_call_operand.vmem [shape: bf16[64,4], index: 1, kind: input, shape index: {}]
  %s2 = inlined_call_operand.vmem [shape: f32[64,1], index: 2, kind: input, shape index: {}]
  %s3 = inlined_call_operand.vmem [shape: bf16[3,32,64], index: 3, kind: input, shape index: {}]
  %s4 = inlined_call_operand.vmem [shape: f32[32,1], index: 4, kind: input, shape index: {}]
  %s5 = inlined_call_operand.hbm [shape: f32[2,32,256], index: 5, kind: output, shape index: {}]
  %s6 = sld [smem:[#allocation0]]
  $region53: #{tpu_custom_call.1} parent=0
    _
  %s8 = ssub.s32 1, %s6
  %s9 = scalar_select 0, %s8, %s6
  $region1: #{tpu_custom_call.1} parent=0
    #allocation3 [shape = 'u8[65536]{0}', space=vmem, size = 0x10000, scoped, tag = 'output window, operand 0']
    #allocation4 [shape = 's32[2]{0}', space=sflag, size = 0x8, scoped, tag = 'scoped memory for tpu_custom_call.1']
    %10 = vsyncpa [#allocation4], 0
    %s11 = scalar_lea.sflag [#allocation4], 1
    %12 = vsyncpa %s11, 0
    loop: start=0, step=1, limit=4
    $region2: #{tpu_custom_call.1} parent=1 // loop_pre_header
      _
    $region3: #{tpu_custom_call.1} parent=1 // loop_header
      %s14 = sphi 0, %s18
      %p15 = scmp.ge.s32.totalorder %s14, 4
      %s24 = sphi 0, %s26
      %s27 = sphi 0, %s24
      %s28 = sphi 0, %s27
      %s44 = sphi 0, %s28
      %s48 = sphi 0, %s48
      %s50 = sphi 0, %s48
      %s51 = sphi 0, %s50
      %s65 = sphi 0, %s51
      %s69 = sphi 0, %s69
      %s71 = sphi 0, %s69
      %s72 = sphi 0, %s71
      %s86 = sphi 0, %s72
      %s90 = sphi 0, %s90
      %s92 = sphi 0, %s90
      %s93 = sphi 0, %s92
      %s107 = sphi 0, %s93
      %s111 = sphi 0, %s111
      %s113 = sphi 0, %s111
      %s114 = sphi 0, %s113
      %s128 = sphi 0, %s114
      %s134 = sphi 0, %s136
      %s137 = sphi 0, %s134
      %s138 = sphi 0, %s137
      %s154 = sphi 0, %s138
    $region4: #{tpu_custom_call.1} parent=1 // loop_header_branch
      %17 = sbr.rel (%p15) target = $region8
    $region5: #{tpu_custom_call.1} parent=1 // loop_body
      %s19 = ssub.s32 %s14, 1
      %s20 = ssub.s32 %s14, 2
      %s21 = sadd.s32 %s14, 1
      %s22 = ssub.s32 %s14, %s21
      %p23 = scmp.eq.s32.totalorder %s22, 0
      %s25 = sadd.s32 %s24, 1
      %s26 = scalar_select %p23, %s24, %s25
      %p29 = pneg %p23
      %p30 = scmp.eq.s32.totalorder %s14, 1
      %p31 = por %p29, %p30
      %p32 = scmp.ne.s32.totalorder %s24, %s27
      %p33 = scmp.eq.s32.totalorder %s14, 0
      %p34 = por %p32, %p33
      %p35 = scmp.ne.s32.totalorder %s24, %s27
      %p36 = scmp.eq.s32.totalorder %s19, 1
      %p37 = por %p35, %p36
      %p38 = scmp.ne.s32.totalorder %s27, %s28
      %p39 = scmp.eq.s32.totalorder %s19, 0
      %p40 = por %p38, %p39
      %p41 = scmp.ne.s32.totalorder %s27, %s28
      %p42 = scmp.eq.s32.totalorder %s20, 1
      %p43 = por %p41, %p42
      %p45 = scmp.ne.s32.totalorder %s28, %s44
      %p46 = scmp.eq.s32.totalorder %s20, 0
      %p47 = por %p45, %p46
      %s49 = sadd.s32 %s48, 1
      %p52 = scmp.eq.s32.totalorder %s14, 1
      %p53 = scmp.ne.s32.totalorder %s48, %s50
      %p54 = scmp.eq.s32.totalorder %s14, 0
      %p55 = por %p53, %p54
      %p56 = scmp.ne.s32.totalorder %s48, %s50
      %p57 = scmp.eq.s32.totalorder %s19, 1
      %p58 = por %p56, %p57
      %p59 = scmp.ne.s32.totalorder %s50, %s51
      %p60 = scmp.eq.s32.totalorder %s19, 0
      %p61 = por %p59, %p60
      %p62 = scmp.ne.s32.totalorder %s50, %s51
      %p63 = scmp.eq.s32.totalorder %s20, 1
      %p64 = por %p62, %p63
      %p66 = scmp.ne.s32.totalorder %s51, %s65
      %p67 = scmp.eq.s32.totalorder %s20, 0
      %p68 = por %p66, %p67
      %s70 = sadd.s32 %s69, 1
      %p73 = scmp.eq.s32.totalorder %s14, 1
      %p74 = scmp.ne.s32.totalorder %s69, %s71
      %p75 = scmp.eq.s32.totalorder %s14, 0
      %p76 = por %p74, %p75
      %p77 = scmp.ne.s32.totalorder %s69, %s71
      %p78 = scmp.eq.s32.totalorder %s19, 1
      %p79 = por %p77, %p78
      %p80 = scmp.ne.s32.totalorder %s71, %s72
      %p81 = scmp.eq.s32.totalorder %s19, 0
      %p82 = por %p80, %p81
      %p83 = scmp.ne.s32.totalorder %s71, %s72
      %p84 = scmp.eq.s32.totalorder %s20, 1
      %p85 = por %p83, %p84
      %p87 = scmp.ne.s32.totalorder %s72, %s86
      %p88 = scmp.eq.s32.totalorder %s20, 0
      %p89 = por %p87, %p88
      %s91 = sadd.s32 %s90, 1
      %p94 = scmp.eq.s32.totalorder %s14, 1
      %p95 = scmp.ne.s32.totalorder %s90, %s92
      %p96 = scmp.eq.s32.totalorder %s14, 0
      %p97 = por %p95, %p96
      %p98 = scmp.ne.s32.totalorder %s90, %s92
      %p99 = scmp.eq.s32.totalorder %s19, 1
      %p100 = por %p98, %p99
      %p101 = scmp.ne.s32.totalorder %s92, %s93
      %p102 = scmp.eq.s32.totalorder %s19, 0
      %p103 = por %p101, %p102
      %p104 = scmp.ne.s32.totalorder %s92, %s93
      %p105 = scmp.eq.s32.totalorder %s20, 1
      %p106 = por %p104, %p105
      %p108 = scmp.ne.s32.totalorder %s93, %s107
      %p109 = scmp.eq.s32.totalorder %s20, 0
      %p110 = por %p108, %p109
      %s112 = sadd.s32 %s111, 1
      %p115 = scmp.eq.s32.totalorder %s14, 1
      %p116 = scmp.ne.s32.totalorder %s111, %s113
      %p117 = scmp.eq.s32.totalorder %s14, 0
      %p118 = por %p116, %p117
      %p119 = scmp.ne.s32.totalorder %s111, %s113
      %p120 = scmp.eq.s32.totalorder %s19, 1
      %p121 = por %p119, %p120
      %p122 = scmp.ne.s32.totalorder %s113, %s114
      %p123 = scmp.eq.s32.totalorder %s19, 0
      %p124 = por %p122, %p123
      %p125 = scmp.ne.s32.totalorder %s113, %s114
      %p126 = scmp.eq.s32.totalorder %s20, 1
      %p127 = por %p125, %p126
      %p129 = scmp.ne.s32.totalorder %s114, %s128
      %p130 = scmp.eq.s32.totalorder %s20, 0
      %p131 = por %p129, %p130
      %s132 = ssub.s32 %s14, %s21
      %p133 = scmp.eq.s32.totalorder %s132, 0
      %s135 = sadd.s32 %s134, 1
      %s136 = scalar_select %p133, %s134, %s135
      %p139 = pneg %p133
      %p140 = scmp.eq.s32.totalorder %s14, 1
      %p141 = por %p139, %p140
      %p142 = scmp.ne.s32.totalorder %s134, %s137
      %p143 = scmp.eq.s32.totalorder %s14, 0
      %p144 = por %p142, %p143
      %p145 = scmp.ne.s32.totalorder %s134, %s137
      %p146 = scmp.eq.s32.totalorder %s19, 1
      %p147 = por %p145, %p146
      %p148 = scmp.ne.s32.totalorder %s137, %s138
      %p149 = scmp.eq.s32.totalorder %s19, 0
      %p150 = por %p148, %p149
      %p151 = scmp.ne.s32.totalorder %s137, %s138
      %p152 = scmp.eq.s32.totalorder %s20, 1
      %p153 = por %p151, %p152
      %p155 = scmp.ne.s32.totalorder %s138, %s154
      %p156 = scmp.eq.s32.totalorder %s20, 0
      %p157 = por %p155, %p156
      %p158 = scmp.le.s32.totalorder 1, %s14
      %p159 = scmp.lt.s32.totalorder %s14, 3
      %p160 = pnand %p158, %p159
      %p161 = pneg %p160
      // Predicated region
      $region9: #{tpu_custom_call.1} parent=5 // pred_check
        _
      $region10: #{tpu_custom_call.1} parent=5 // pred_check_branch
        %163 = sbr.rel (%p160) target = $region12
      $region11: #{tpu_custom_call.1} parent=5 // pred_region
        %s164 = ssub.s32 %s14, 1
        // Predicated region
        $region13: #{tpu_custom_call.1} parent=11 // pred_check
          %p165 = pneg %p61
        $region14: #{tpu_custom_call.1} parent=11 // pred_check_branch
          %167 = sbr.rel (%p165) target = $region16
        $region15: #{tpu_custom_call.1} parent=11 // pred_region
          _
        $region16: #{tpu_custom_call.1} parent=11 // pred_fallthru
          _
        // Predicated region
        $region17: #{tpu_custom_call.1} parent=11 // pred_check
          %p168 = pneg %p82
        $region18: #{tpu_custom_call.1} parent=11 // pred_check_branch
          %170 = sbr.rel (%p168) target = $region20
        $region19: #{tpu_custom_call.1} parent=11 // pred_region
          _
        $region20: #{tpu_custom_call.1} parent=11 // pred_fallthru
          _
        // Predicated region
        $region21: #{tpu_custom_call.1} parent=11 // pred_check
          %p171 = pneg %p103
        $region22: #{tpu_custom_call.1} parent=11 // pred_check_branch
          %173 = sbr.rel (%p171) target = $region24
        $region23: #{tpu_custom_call.1} parent=11 // pred_region
          _
        $region24: #{tpu_custom_call.1} parent=11 // pred_fallthru
          _
        // Predicated region
        $region25: #{tpu_custom_call.1} parent=11 // pred_check
          %p174 = pneg %p124
        $region26: #{tpu_custom_call.1} parent=11 // pred_check_branch
          %176 = sbr.rel (%p174) target = $region28
        $region27: #{tpu_custom_call.1} parent=11 // pred_region
          _
        $region28: #{tpu_custom_call.1} parent=11 // pred_fallthru
          _
      $region12: #{tpu_custom_call.1} parent=5 // pred_fallthru
        _
      %p177 = scmp.lt.s32.totalorder %s14, 2
      // Predicated region
      $region29: #{tpu_custom_call.1} parent=5 // pred_check
        %p178 = pneg %p177
      $region30: #{tpu_custom_call.1} parent=5 // pred_check_branch
        %180 = sbr.rel (%p178) target = $region32
      $region31: #{tpu_custom_call.1} parent=5 // pred_region
        // Predicated region
        $region33: #{tpu_custom_call.1} parent=31 // pred_check
          %p181 = pneg %p34
        $region34: #{tpu_custom_call.1} parent=31 // pred_check_branch
          %183 = sbr.rel (%p181) target = $region36
        $region35: #{tpu_custom_call.1} parent=31 // pred_region
          %p184 = scmp.lt.s32.totalorder %s14, 1
          %s185 = scalar_select %p184, %s14, 1
          %s186 = smul.addr %s185, 2
          %s187 = smul.addr %s186, 4
          %s188 = scalar_lea.vmem %s0, %s187
        $region36: #{tpu_custom_call.1} parent=31 // pred_fallthru
          _
      $region32: #{tpu_custom_call.1} parent=5 // pred_fallthru
        _
      %p189 = scmp.le.s32.totalorder 1, %s14
      %p190 = scmp.lt.s32.totalorder %s14, 3
      %p191 = pnand %p189, %p190
      %p192 = pneg %p191
      // Predicated region
      $region37: #{tpu_custom_call.1} parent=5 // pred_check
        _
      $region38: #{tpu_custom_call.1} parent=5 // pred_check_branch
        %194 = sbr.rel (%p191) target = $region40
      $region39: #{tpu_custom_call.1} parent=5 // pred_region
        %s195 = ssub.s32 %s14, 1
        %p196 = scmp.lt.s32.totalorder %s19, 1
        %s197 = scalar_select %p196, %s19, 1
        %s198 = smul.addr %s197, 2
        %s199 = smul.addr %s198, 4
        %s200 = scalar_lea.vmem %s0, %s199
        %p201 = pneg %p40
        %p202 = pneg %p37
        %p203 = pneg %p61
        %p204 = pneg %p58
        %p205 = pneg %p82
        %p206 = pneg %p79
        %p207 = pneg %p103
        %p208 = pneg %p100
        %p209 = pneg %p124
        %p210 = pneg %p121
        %p211 = pneg %p150
        %p212 = pneg %p147
        %s213 = sand.u32 %s137, 1
        %s214 = scalar_lea.sflag [#allocation4], %s213
        %s215 = sand.u32 %s137, 1
        %s216 = smul.addr %s215, 64
        %s217 = scalar_lea.vmem [#allocation3], %s216
        %p218 = scmp.lt.s32.totalorder %s19, 1
        %s219 = scalar_select %p218, %s19, 1
        %s220 = smul.addr %s219, 2
        %s221 = smul.addr %s220, 4
        %s222 = scalar_lea.vmem %s0, %s221
        %v224 = vld [vmem:[%s1] sm:$0xf]
        %v225 = vld [vmem:[%s1 + $0x4] sm:$0xf]
        %v226 = vld [vmem:[%s1 + $0x8] sm:$0xf]
        %v227 = vld [vmem:[%s1 + $0xc] sm:$0xf]
        %v228 = vld [vmem:[%s1 + $0x10] sm:$0xf]
        %v229 = vld [vmem:[%s1 + $0x14] sm:$0xf]
        %v230 = vld [vmem:[%s1 + $0x18] sm:$0xf]
        %v231 = vld [vmem:[%s1 + $0x1c] sm:$0xf]
        %v232 = vld [vmem:[%s2] sm:$0xff]
        %v233 = vld [vmem:[%s2 + $0x8] sm:$0xff]
        %v234 = vld [vmem:[%s2 + $0x10] sm:$0xff]
        %v235 = vld [vmem:[%s2 + $0x18] sm:$0xff]
        %v236 = vld [vmem:[%s2 + $0x20] sm:$0xff]
        %v237 = vld [vmem:[%s2 + $0x28] sm:$0xff]
        %v238 = vld [vmem:[%s2 + $0x30] sm:$0xff]
        %v239 = vld [vmem:[%s2 + $0x38] sm:$0xff]
        %v240 = vld [vmem:[%s3] sm:$0xf]
        %v241 = vld [vmem:[%s3 + $0x4] sm:$0xf]
        %v242 = vld [vmem:[%s3 + $0x8] sm:$0xf]
        %v243 = vld [vmem:[%s3 + $0xc] sm:$0xf]
        %s244 = scalar_lea.vmem %s3, 16
        %v245 = vld [vmem:[%s244] sm:$0xf]
        %v246 = vld [vmem:[%s244 + $0x4] sm:$0xf]
        %v247 = vld [vmem:[%s244 + $0x8] sm:$0xf]
        %v248 = vld [vmem:[%s244 + $0xc] sm:$0xf]
        %s249 = scalar_lea.vmem %s3, 32
        %v250 = vld [vmem:[%s249] sm:$0xf]
        %v251 = vld [vmem:[%s249 + $0x4] sm:$0xf]
        %v252 = vld [vmem:[%s249 + $0x8] sm:$0xf]
        %v253 = vld [vmem:[%s249 + $0xc] sm:$0xf]
        %v254 = vld [vmem:[%s4] sm:$0xff]
        %v255 = vld [vmem:[%s4 + $0x8] sm:$0xff]
        %v256 = vld [vmem:[%s4 + $0x10] sm:$0xff]
        %v257 = vld [vmem:[%s4 + $0x18] sm:$0xff]
        %258 = vst [vmem:[#allocation2] sm:$0xff] 0
        %259 = vst [vmem:[#allocation2 + $0x20] sm:$0xff] 0
        %260 = vst [vmem:[#allocation2 + $0x40] sm:$0xff] 0
        %261 = vst [vmem:[#allocation2 + $0x60] sm:$0xff] 0
        %262 = vst [vmem:[#allocation2 + $0x18] sm:$0xff] 0
        %263 = vst [vmem:[#allocation2 + $0x38] sm:$0xff] 0
        %264 = vst [vmem:[#allocation2 + $0x58] sm:$0xff] 0
        %265 = vst [vmem:[#allocation2 + $0x78] sm:$0xff] 0
        %v266 = vld [vmem:[%s222] sm:$0xff]
        %v268 = vcombine.high %v266, %v266
        %v270 = vpack.c.bf16 %v266, %v266
        %v271 = vpack.c.bf16 %v268, %v268
        %273 = vset.pattern.permute.xlu0 0
        %274 = vperm.xlu0 %273, %v232
        %v275 = vpop.permute.xlu0 %274
        %278 = vset.pattern.permute.xlu0 0
        %279 = vperm.xlu0 %278, %v233
        %v280 = vpop.permute.xlu0 %279
        %283 = vset.pattern.permute.xlu0 0
        %284 = vperm.xlu0 %283, %v234
        %v285 = vpop.permute.xlu0 %284
        %288 = vset.pattern.permute.xlu0 0
        %289 = vperm.xlu0 %288, %v235
        %v290 = vpop.permute.xlu0 %289
        %293 = vset.pattern.permute.xlu0 0
        %294 = vperm.xlu0 %293, %v236
        %v295 = vpop.permute.xlu0 %294
        %298 = vset.pattern.permute.xlu0 0
        %299 = vperm.xlu0 %298, %v237
        %v300 = vpop.permute.xlu0 %299
        %303 = vset.pattern.permute.xlu0 0
        %304 = vperm.xlu0 %303, %v238
        %v305 = vpop.permute.xlu0 %304
        %308 = vset.pattern.permute.xlu0 0
        %309 = vperm.xlu0 %308, %v239
        %v310 = vpop.permute.xlu0 %309
        %v320 = vunpack.c.l.b16 %v224
        %v321 = vunpack.c.l.b16 %v225
        %v322 = vunpack.c.l.b16 %v226
        %v323 = vunpack.c.l.b16 %v227
        %v324 = vunpack.c.l.b16 %v228
        %v325 = vunpack.c.l.b16 %v229
        %v326 = vunpack.c.l.b16 %v230
        %v327 = vunpack.c.l.b16 %v231
        %v328 = vpack.c.b16 %v321, %v320
        %v329 = vpack.c.b16 %v323, %v322
        %v330 = vpack.c.b16 %v325, %v324
        %v331 = vpack.c.b16 %v327, %v326
        %vm332 = vcmask 31744
        %v334 = vsel %vm332, %v328, 0
        %v337 = vsel %vm332, %v329, 0
        %v340 = vsel %vm332, %v330, 0
        %v343 = vsel %vm332, %v331, 0
        %vm345 = vcmask 1041408
        %v347 = vsel %vm345, %v270, 0
        %v350 = vsel %vm345, %v271, 0
        %352 = vmatprep.subr.bf16.mxu0 %v350
        %353 = vmatpush1.bf16.msra.mxu0 %v347
        %354 = vmatprep.subr.bf16.mxu0 0
        %355 = vmatpush1.bf16.msra.mxu0 0
        %356 = vmatprep.subr.bf16.mxu0 0
        %357 = vmatpush1.bf16.msra.mxu0 0
        %358 = vmatprep.subr.bf16.mxu0 0
        %359 = vmatpush1.bf16.msra.mxu0 0
        %360 = vmatprep.subr.bf16.mxu0 0
        %361 = vmatpush1.bf16.msra.mxu0 0
        %362 = vmatprep.subr.bf16.mxu0 0
        %363 = vmatpush1.bf16.msra.mxu0 0
        %364 = vmatprep.subr.bf16.mxu0 0
        %365 = vmatpush1.bf16.msra.mxu0 0
        %366 = vmatprep.subr.bf16.mxu0 0
        %367 = vmatpush1.bf16.msra.mxu0 0
        %368 = vmatprep.subr.bf16.mxu0 0
        %369 = vmatpush1.bf16.msra.mxu0 0
        %370 = vmatprep.subr.bf16.mxu0 0
        %371 = vmatpush1.bf16.msra.mxu0 0
        %372 = vmatprep.subr.bf16.mxu0 0
        %373 = vmatpush1.bf16.msra.mxu0 0
        %374 = vmatprep.subr.bf16.mxu0 0
        %375 = vmatpush1.bf16.msra.mxu0 0
        %376 = vmatprep.subr.bf16.mxu0 0
        %377 = vmatpush1.bf16.msra.mxu0 0
        %378 = vmatprep.subr.bf16.mxu0 0
        %379 = vmatpush1.bf16.msra.mxu0 0
        %380 = vmatprep.subr.bf16.mxu0 0
        %381 = vmatpush1.bf16.msra.mxu0 0
        %382 = vmatprep.subr.bf16.mxu0 0
        %383 = vmatpush1.bf16.msra.mxu0 0
        %384 = vmatprep.mubr.bf16.mxu0 0
        %385 = vmatmul.mubr.bf16.gmra.mrb[0].mxu0 %v334
        %v386 = vpop.f32.mrb[0].mxu0
        %v387 = vadd.f32 %v275, %v386
        %v388 = vpop.f32.mrb[0].mxu0
        %v389 = vadd.f32 %v275, %v388
        %v390 = vpop.f32.mrb[0].mxu0
        %v391 = vadd.f32 %v280, %v390
        %v392 = vpop.f32.mrb[0].mxu0
        %v393 = vadd.f32 %v280, %v392
        %394 = vmatprep.mubr.bf16.mxu0 0
        %395 = vmatmul.mubr.bf16.gmra.mrb[0].mxu0 %v337
        %v396 = vpop.f32.mrb[0].mxu0
        %v397 = vadd.f32 %v285, %v396
        %v398 = vpop.f32.mrb[0].mxu0
        %v399 = vadd.f32 %v285, %v398
        %v400 = vpop.f32.mrb[0].mxu0
        %v401 = vadd.f32 %v290, %v400
        %v402 = vpop.f32.mrb[0].mxu0
        %v403 = vadd.f32 %v290, %v402
        %404 = vmatprep.mubr.bf16.mxu0 0
        %405 = vmatmul.mubr.bf16.gmra.mrb[0].mxu0 %v340
        %v406 = vpop.f32.mrb[0].mxu0
        %v407 = vadd.f32 %v295, %v406
        %v408 = vpop.f32.mrb[0].mxu0
        %v409 = vadd.f32 %v295, %v408
        %v410 = vpop.f32.mrb[0].mxu0
        %v411 = vadd.f32 %v300, %v410
        %v412 = vpop.f32.mrb[0].mxu0
        %v413 = vadd.f32 %v300, %v412
        %414 = vmatprep.mubr.bf16.mxu0 0
        %415 = vmatmul.mubr.bf16.gmra.mrb[0].mxu0 %v343
        %v416 = vpop.f32.mrb[0].mxu0
        %v417 = vadd.f32 %v305, %v416
        %v418 = vpop.f32.mrb[0].mxu0
        %v419 = vadd.f32 %v305, %v418
        %v420 = vpop.f32.mrb[0].mxu0
        %v421 = vadd.f32 %v310, %v420
        %v422 = vpop.f32.mrb[0].mxu0
        %v423 = vadd.f32 %v310, %v422
        %424 = vdwg.mxu0
        %v425 = vmax.f32 %v387, 0.0
        %v426 = vmax.f32 %v389, 0.0
        %v427 = vmax.f32 %v391, 0.0
        %v428 = vmax.f32 %v393, 0.0
        %v429 = vmax.f32 %v397, 0.0
        %v430 = vmax.f32 %v399, 0.0
        %v431 = vmax.f32 %v401, 0.0
        %v432 = vmax.f32 %v403, 0.0
        %v433 = vmax.f32 %v407, 0.0
        %v434 = vmax.f32 %v409, 0.0
        %v435 = vmax.f32 %v411, 0.0
        %v436 = vmax.f32 %v413, 0.0
        %v437 = vmax.f32 %v417, 0.0
        %v438 = vmax.f32 %v419, 0.0
        %v439 = vmax.f32 %v421, 0.0
        %v440 = vmax.f32 %v423, 0.0
        %v441 = vpack.c.bf16 %v427, %v425
        %v442 = vpack.c.bf16 %v428, %v426
        %v443 = vpack.c.bf16 %v431, %v429
        %v444 = vpack.c.bf16 %v432, %v430
        %v445 = vpack.c.bf16 %v435, %v433
        %v446 = vpack.c.bf16 %v436, %v434
        %v447 = vpack.c.bf16 %v439, %v437
        %v448 = vpack.c.bf16 %v440, %v438
        %449 = vst [vmem:[#allocation2 + $0x8] sm:$0xff] %v441
        %450 = vst [vmem:[#allocation2 + $0x10] sm:$0xff] %v442
        %451 = vst [vmem:[#allocation2 + $0x28] sm:$0xff] %v443
        %452 = vst [vmem:[#allocation2 + $0x30] sm:$0xff] %v444
        %453 = vst [vmem:[#allocation2 + $0x48] sm:$0xff] %v445
        %454 = vst [vmem:[#allocation2 + $0x50] sm:$0xff] %v446
        %455 = vst [vmem:[#allocation2 + $0x68] sm:$0xff] %v447
        %456 = vst [vmem:[#allocation2 + $0x70] sm:$0xff] %v448
        %v457 = vld [vmem:[#allocation2] sm:$0xff]
        %v458 = vld [vmem:[#allocation2 + $0x8] sm:$0xff]
        %v459 = vld [vmem:[#allocation2 + $0x10] sm:$0xff]
        %v460 = vld [vmem:[#allocation2 + $0x20] sm:$0xff]
        %v461 = vld [vmem:[#allocation2 + $0x28] sm:$0xff]
        %v462 = vld [vmem:[#allocation2 + $0x30] sm:$0xff]
        %v463 = vld [vmem:[#allocation2 + $0x40] sm:$0xff]
        %v464 = vld [vmem:[#allocation2 + $0x48] sm:$0xff]
        %v465 = vld [vmem:[#allocation2 + $0x50] sm:$0xff]
        %v466 = vld [vmem:[#allocation2 + $0x60] sm:$0xff]
        %v467 = vld [vmem:[#allocation2 + $0x68] sm:$0xff]
        %v468 = vld [vmem:[#allocation2 + $0x70] sm:$0xff]
        %v473 = vunpack.c.l.b16 %v245
        %v474 = vunpack.c.l.b16 %v246
        %v475 = vunpack.c.l.b16 %v247
        %v476 = vunpack.c.l.b16 %v248
        %v477 = vpack.c.b16 %v474, %v473
        %v478 = vpack.c.b16 %v476, %v475
        %vm479 = vcmask 523264
        %v481 = vsel %vm479, %v477, 0
        %v484 = vsel %vm479, %v478, 0
        %486 = vmatprep.subr.bf16.mxu0 %v442
        %487 = vmatpush1.bf16.msra.mxu0 %v441
        %488 = vmatprep.subr.bf16.mxu0 %v444
        %489 = vmatpush1.bf16.msra.mxu0 %v443
        %490 = vmatprep.subr.bf16.mxu0 %v446
        %491 = vmatpush1.bf16.msra.mxu0 %v445
        %492 = vmatprep.subr.bf16.mxu0 %v448
        %493 = vmatpush1.bf16.msra.mxu0 %v447
        %494 = vmatprep.subr.bf16.mxu0 0
        %495 = vmatpush1.bf16.msra.mxu0 0
        %496 = vmatprep.subr.bf16.mxu0 0
        %497 = vmatpush1.bf16.msra.mxu0 0
        %498 = vmatprep.subr.bf16.mxu0 0
        %499 = vmatpush1.bf16.msra.mxu0 0
        %500 = vmatprep.subr.bf16.mxu0 0
        %501 = vmatpush1.bf16.msra.mxu0 0
        %502 = vmatprep.subr.bf16.mxu0 0
        %503 = vmatpush1.bf16.msra.mxu0 0
        %504 = vmatprep.subr.bf16.mxu0 0
        %505 = vmatpush1.bf16.msra.mxu0 0
        %506 = vmatprep.subr.bf16.mxu0 0
        %507 = vmatpush1.bf16.msra.mxu0 0
        %508 = vmatprep.subr.bf16.mxu0 0
        %509 = vmatpush1.bf16.msra.mxu0 0
        %510 = vmatprep.subr.bf16.mxu0 0
        %511 = vmatpush1.bf16.msra.mxu0 0
        %512 = vmatprep.subr.bf16.mxu0 0
        %513 = vmatpush1.bf16.msra.mxu0 0
        %514 = vmatprep.subr.bf16.mxu0 0
        %515 = vmatpush1.bf16.msra.mxu0 0
        %516 = vmatprep.subr.bf16.mxu0 0
        %517 = vmatpush1.bf16.msra.mxu0 0
        %518 = vmatprep.mubr.bf16.mxu0 0
        %519 = vmatmul.mubr.bf16.gmra.mrb[0].mxu0 %v481
        %v520 = vpop.f32.mrb[0].mxu0
        %v521 = vadd.f32 0.0, %v520
        %v522 = vpop.f32.mrb[0].mxu0
        %v523 = vadd.f32 0.0, %v522
        %v524 = vpop.f32.mrb[0].mxu0
        %v525 = vadd.f32 0.0, %v524
        %v526 = vpop.f32.mrb[0].mxu0
        %v527 = vadd.f32 0.0, %v526
        %528 = vmatprep.mubr.bf16.mxu0 0
        %529 = vmatmul.mubr.bf16.gmra.mrb[0].mxu0 %v484
        %v530 = vpop.f32.mrb[0].mxu0
        %v531 = vadd.f32 0.0, %v530
        %v532 = vpop.f32.mrb[0].mxu0
        %v533 = vadd.f32 0.0, %v532
        %v534 = vpop.f32.mrb[0].mxu0
        %v535 = vadd.f32 0.0, %v534
        %v536 = vpop.f32.mrb[0].mxu0
        %v537 = vadd.f32 0.0, %v536
        %538 = vdwg.mxu0
        %v543 = vunpack.c.l.b16 %v240
        %v544 = vunpack.c.l.b16 %v241
        %v545 = vunpack.c.l.b16 %v242
        %v546 = vunpack.c.l.b16 %v243
        %v547 = vpack.c.b16 %v544, %v543
        %v548 = vpack.c.b16 %v546, %v545
        %561 = vrot.lane.b32.xlu0 %v457, 16
        %v562 = vpop.permute.xlu0 %561
        %563 = vrot.lane.b32.xlu0 %v458, 16
        %v564 = vpop.permute.xlu0 %563
        %565 = vrot.lane.b32.xlu0 %v459, 16
        %v566 = vpop.permute.xlu0 %565
        %567 = vrot.lane.b32.xlu0 %v460, 16
        %v568 = vpop.permute.xlu0 %567
        %569 = vrot.lane.b32.xlu0 %v461, 16
        %v570 = vpop.permute.xlu0 %569
        %571 = vrot.lane.b32.xlu0 %v462, 16
        %v572 = vpop.permute.xlu0 %571
        %573 = vrot.lane.b32.xlu0 %v463, 16
        %v574 = vpop.permute.xlu0 %573
        %575 = vrot.lane.b32.xlu0 %v464, 16
        %v576 = vpop.permute.xlu0 %575
        %577 = vrot.lane.b32.xlu0 %v465, 16
        %v578 = vpop.permute.xlu0 %577
        %579 = vrot.lane.b32.xlu0 %v466, 16
        %v580 = vpop.permute.xlu0 %579
        %581 = vrot.lane.b32.xlu0 %v467, 16
        %v582 = vpop.permute.xlu0 %581
        %583 = vrot.lane.b32.xlu0 %v468, 16
        %v584 = vpop.permute.xlu0 %583
        %vm585 = vcmask 130048
        %v586 = vsel %vm585, %v562, %v564
        %v587 = vsel %vm585, %v564, %v566
        %v588 = vsel %vm585, %v568, %v570
        %v589 = vsel %vm585, %v570, %v572
        %v590 = vsel %vm585, %v574, %v576
        %v591 = vsel %vm585, %v576, %v578
        %v592 = vsel %vm585, %v580, %v582
        %v593 = vsel %vm585, %v582, %v584
        %v603 = vsel %vm479, %v547, 0
        %v606 = vsel %vm479, %v548, 0
        %608 = vmatprep.subr.bf16.mxu0 %v587
        %609 = vmatpush1.bf16.msra.mxu0 %v586
        %610 = vmatprep.subr.bf16.mxu0 %v589
        %611 = vmatpush1.bf16.msra.mxu0 %v588
        %612 = vmatprep.subr.bf16.mxu0 %v591
        %613 = vmatpush1.bf16.msra.mxu0 %v590
        %614 = vmatprep.subr.bf16.mxu0 %v593
        %615 = vmatpush1.bf16.msra.mxu0 %v592
        %616 = vmatprep.subr.bf16.mxu0 0
        %617 = vmatpush1.bf16.msra.mxu0 0
        %618 = vmatprep.subr.bf16.mxu0 0
        %619 = vmatpush1.bf16.msra.mxu0 0
        %620 = vmatprep.subr.bf16.mxu0 0
        %621 = vmatpush1.bf16.msra.mxu0 0
        %622 = vmatprep.subr.bf16.mxu0 0
        %623 = vmatpush1.bf16.msra.mxu0 0
        %624 = vmatprep.subr.bf16.mxu0 0
        %625 = vmatpush1.bf16.msra.mxu0 0
        %626 = vmatprep.subr.bf16.mxu0 0
        %627 = vmatpush1.bf16.msra.mxu0 0
        %628 = vmatprep.subr.bf16.mxu0 0
        %629 = vmatpush1.bf16.msra.mxu0 0
        %630 = vmatprep.subr.bf16.mxu0 0
        %631 = vmatpush1.bf16.msra.mxu0 0
        %632 = vmatprep.subr.bf16.mxu0 0
        %633 = vmatpush1.bf16.msra.mxu0 0
        %634 = vmatprep.subr.bf16.mxu0 0
        %635 = vmatpush1.bf16.msra.mxu0 0
        %636 = vmatprep.subr.bf16.mxu0 0
        %637 = vmatpush1.bf16.msra.mxu0 0
        %638 = vmatprep.subr.bf16.mxu0 0
        %639 = vmatpush1.bf16.msra.mxu0 0
        %640 = vmatprep.mubr.bf16.mxu0 0
        %641 = vmatmul.mubr.bf16.gmra.mrb[0].mxu0 %v603
        %v642 = vpop.f32.mrb[0].mxu0
        %v643 = vadd.f32 %v521, %v642
        %v644 = vpop.f32.mrb[0].mxu0
        %v645 = vadd.f32 %v523, %v644
        %v646 = vpop.f32.mrb[0].mxu0
        %v647 = vadd.f32 %v525, %v646
        %v648 = vpop.f32.mrb[0].mxu0
        %v649 = vadd.f32 %v527, %v648
        %650 = vmatprep.mubr.bf16.mxu0 0
        %651 = vmatmul.mubr.bf16.gmra.mrb[0].mxu0 %v606
        %v652 = vpop.f32.mrb[0].mxu0
        %v653 = vadd.f32 %v531, %v652
        %v654 = vpop.f32.mrb[0].mxu0
        %v655 = vadd.f32 %v533, %v654
        %v656 = vpop.f32.mrb[0].mxu0
        %v657 = vadd.f32 %v535, %v656
        %v658 = vpop.f32.mrb[0].mxu0
        %v659 = vadd.f32 %v537, %v658
        %660 = vdwg.mxu0
        %v661 = vld [vmem:[#allocation2 + $0x8] sm:$0xff]
        %v662 = vld [vmem:[#allocation2 + $0x10] sm:$0xff]
        %v663 = vld [vmem:[#allocation2 + $0x18] sm:$0xff]
        %v664 = vld [vmem:[#allocation2 + $0x28] sm:$0xff]
        %v665 = vld [vmem:[#allocation2 + $0x30] sm:$0xff]
        %v666 = vld [vmem:[#allocation2 + $0x38] sm:$0xff]
        %v667 = vld [vmem:[#allocation2 + $0x48] sm:$0xff]
        %v668 = vld [vmem:[#allocation2 + $0x50] sm:$0xff]
        %v669 = vld [vmem:[#allocation2 + $0x58] sm:$0xff]
        %v670 = vld [vmem:[#allocation2 + $0x68] sm:$0xff]
        %v671 = vld [vmem:[#allocation2 + $0x70] sm:$0xff]
        %v672 = vld [vmem:[#allocation2 + $0x78] sm:$0xff]
        %v677 = vunpack.c.l.b16 %v250
        %v678 = vunpack.c.l.b16 %v251
        %v679 = vunpack.c.l.b16 %v252
        %v680 = vunpack.c.l.b16 %v253
        %v681 = vpack.c.b16 %v678, %v677
        %v682 = vpack.c.b16 %v680, %v679
        %695 = vrot.lane.b32.xlu0 %v661, 112
        %v696 = vpop.permute.xlu0 %695
        %697 = vrot.lane.b32.xlu0 %v662, 112
        %v698 = vpop.permute.xlu0 %697
        %699 = vrot.lane.b32.xlu0 %v663, 112
        %v700 = vpop.permute.xlu0 %699
        %701 = vrot.lane.b32.xlu0 %v664, 112
        %v702 = vpop.permute.xlu0 %701
        %703 = vrot.lane.b32.xlu0 %v665, 112
        %v704 = vpop.permute.xlu0 %703
        %705 = vrot.lane.b32.xlu0 %v666, 112
        %v706 = vpop.permute.xlu0 %705
        %707 = vrot.lane.b32.xlu0 %v667, 112
        %v708 = vpop.permute.xlu0 %707
        %709 = vrot.lane.b32.xlu0 %v668, 112
        %v710 = vpop.permute.xlu0 %709
        %711 = vrot.lane.b32.xlu0 %v669, 112
        %v712 = vpop.permute.xlu0 %711
        %713 = vrot.lane.b32.xlu0 %v670, 112
        %v714 = vpop.permute.xlu0 %713
        %715 = vrot.lane.b32.xlu0 %v671, 112
        %v716 = vpop.permute.xlu0 %715
        %717 = vrot.lane.b32.xlu0 %v672, 112
        %v718 = vpop.permute.xlu0 %717
        %vm719 = vcmask 916480
        %v720 = vsel %vm719, %v696, %v698
        %v721 = vsel %vm719, %v698, %v700
        %v722 = vsel %vm719, %v702, %v704
        %v723 = vsel %vm719, %v704, %v706
        %v724 = vsel %vm719, %v708, %v710
        %v725 = vsel %vm719, %v710, %v712
        %v726 = vsel %vm719, %v714, %v716
        %v727 = vsel %vm719, %v716, %v718
        %v737 = vsel %vm479, %v681, 0
        %v740 = vsel %vm479, %v682, 0
        %742 = vmatprep.subr.bf16.mxu0 %v721
        %743 = vmatpush1.bf16.msra.mxu0 %v720
        %744 = vmatprep.subr.bf16.mxu0 %v723
        %745 = vmatpush1.bf16.msra.mxu0 %v722
        %746 = vmatprep.subr.bf16.mxu0 %v725
        %747 = vmatpush1.bf16.msra.mxu0 %v724
        %748 = vmatprep.subr.bf16.mxu0 %v727
        %749 = vmatpush1.bf16.msra.mxu0 %v726
        %750 = vmatprep.subr.bf16.mxu0 0
        %751 = vmatpush1.bf16.msra.mxu0 0
        %752 = vmatprep.subr.bf16.mxu0 0
        %753 = vmatpush1.bf16.msra.mxu0 0
        %754 = vmatprep.subr.bf16.mxu0 0
        %755 = vmatpush1.bf16.msra.mxu0 0
        %756 = vmatprep.subr.bf16.mxu0 0
        %757 = vmatpush1.bf16.msra.mxu0 0
        %758 = vmatprep.subr.bf16.mxu0 0
        %759 = vmatpush1.bf16.msra.mxu0 0
        %760 = vmatprep.subr.bf16.mxu0 0
        %761 = vmatpush1.bf16.msra.mxu0 0
        %762 = vmatprep.subr.bf16.mxu0 0
        %763 = vmatpush1.bf16.msra.mxu0 0
        %764 = vmatprep.subr.bf16.mxu0 0
        %765 = vmatpush1.bf16.msra.mxu0 0
        %766 = vmatprep.subr.bf16.mxu0 0
        %767 = vmatpush1.bf16.msra.mxu0 0
        %768 = vmatprep.subr.bf16.mxu0 0
        %769 = vmatpush1.bf16.msra.mxu0 0
        %770 = vmatprep.subr.bf16.mxu0 0
        %771 = vmatpush1.bf16.msra.mxu0 0
        %772 = vmatprep.subr.bf16.mxu0 0
        %773 = vmatpush1.bf16.msra.mxu0 0
        %774 = vmatprep.mubr.bf16.mxu0 0
        %775 = vmatmul.mubr.bf16.gmra.mrb[0].mxu0 %v737
        %v776 = vpop.f32.mrb[0].mxu0
        %v777 = vadd.f32 0.0, %v776
        %v778 = vpop.f32.mrb[0].mxu0
        %v779 = vadd.f32 0.0, %v778
        %v780 = vpop.f32.mrb[0].mxu0
        %v781 = vadd.f32 0.0, %v780
        %v782 = vpop.f32.mrb[0].mxu0
        %v783 = vadd.f32 0.0, %v782
        %784 = vmatprep.mubr.bf16.mxu0 0
        %785 = vmatmul.mubr.bf16.gmra.mrb[0].mxu0 %v740
        %v786 = vpop.f32.mrb[0].mxu0
        %v787 = vadd.f32 0.0, %v786
        %v788 = vpop.f32.mrb[0].mxu0
        %v789 = vadd.f32 0.0, %v788
        %v790 = vpop.f32.mrb[0].mxu0
        %v791 = vadd.f32 0.0, %v790
        %v792 = vpop.f32.mrb[0].mxu0
        %v793 = vadd.f32 0.0, %v792
        %794 = vdwg.mxu0
        %v795 = vadd.f32 %v643, %v777
        %v796 = vadd.f32 %v645, %v779
        %v797 = vadd.f32 %v647, %v781
        %v798 = vadd.f32 %v649, %v783
        %v799 = vadd.f32 %v653, %v787
        %v800 = vadd.f32 %v655, %v789
        %v801 = vadd.f32 %v657, %v791
        %v802 = vadd.f32 %v659, %v793
        %804 = vset.pattern.permute.xlu0 0
        %805 = vperm.xlu0 %804, %v254
        %v806 = vpop.permute.xlu0 %805
        %809 = vset.pattern.permute.xlu0 0
        %810 = vperm.xlu0 %809, %v255
        %v811 = vpop.permute.xlu0 %810
        %814 = vset.pattern.permute.xlu0 0
        %815 = vperm.xlu0 %814, %v256
        %v816 = vpop.permute.xlu0 %815
        %819 = vset.pattern.permute.xlu0 0
        %820 = vperm.xlu0 %819, %v257
        %v821 = vpop.permute.xlu0 %820
        %v823 = vadd.f32 %v795, %v806
        %v824 = vadd.f32 %v796, %v806
        %v825 = vadd.f32 %v797, %v811
        %v826 = vadd.f32 %v798, %v811
        %v827 = vadd.f32 %v799, %v816
        %v828 = vadd.f32 %v800, %v816
        %v829 = vadd.f32 %v801, %v821
        %v830 = vadd.f32 %v802, %v821
        %831 = vst [vmem:[%s217] sm:$0xff] %v823
        %832 = vst [vmem:[%s217 + $0x8] sm:$0xff] %v824
        %833 = vst [vmem:[%s217 + $0x10] sm:$0xff] %v825
        %834 = vst [vmem:[%s217 + $0x18] sm:$0xff] %v826
        %835 = vst [vmem:[%s217 + $0x20] sm:$0xff] %v827
        %836 = vst [vmem:[%s217 + $0x28] sm:$0xff] %v828
        %837 = vst [vmem:[%s217 + $0x30] sm:$0xff] %v829
        %838 = vst [vmem:[%s217 + $0x38] sm:$0xff] %v830
        %s839 = sand.u32 %s137, 1
        %s840 = scalar_lea.sflag [#allocation4], %s839
        %s841 = sand.u32 %s137, 1
        %s842 = smul.addr %s841, 64
        %s843 = scalar_lea.vmem [#allocation3], %s842
        // Predicated region
        $region41: #{tpu_custom_call.1} parent=39 // pred_check
          %p844 = pneg %p147
        $region42: #{tpu_custom_call.1} parent=39 // pred_check_branch
          %846 = sbr.rel (%p844) target = $region44
        $region43: #{tpu_custom_call.1} parent=39 // pred_region
          %s848 = ssub.s32 1024, 1024
          %849 = vsyncadd %s840, %s848
          %s850 = smul.addr %s19, 8
          %s851 = smul.addr %s850, 128
          %s852 = scalar_lea.hbm %s5, %s851
          %s853 = sshll.u32 %s843, 4
          %s854 = int_to_ptr.vmem [resolvable:$true] %s853
          %859 = dma.vmem_to_hbm [thread:$0]  %s854, 1024, %s852, %s840, 256, 256, 16
        $region44: #{tpu_custom_call.1} parent=39 // pred_fallthru
          _
      $region40: #{tpu_custom_call.1} parent=5 // pred_fallthru
        _
      %p860 = scmp.le.s32.totalorder 2, %s14
      // Predicated region
      $region45: #{tpu_custom_call.1} parent=5 // pred_check
        %p861 = pneg %p860
      $region46: #{tpu_custom_call.1} parent=5 // pred_check_branch
        %863 = sbr.rel (%p861) target = $region48
      $region47: #{tpu_custom_call.1} parent=5 // pred_region
        %s864 = ssub.s32 %s14, 2
        // Predicated region
        $region49: #{tpu_custom_call.1} parent=47 // pred_check
          %p865 = pneg %p153
        $region50: #{tpu_custom_call.1} parent=47 // pred_check_branch
          %867 = sbr.rel (%p865) target = $region52
        $region51: #{tpu_custom_call.1} parent=47 // pred_region
          %s868 = sand.u32 %s138, 1
          %s869 = scalar_lea.sflag [#allocation4], %s868
          %s870 = sand.u32 %s138, 1
          %s871 = smul.addr %s870, 64
          %s872 = scalar_lea.vmem [#allocation3], %s871
          %873 = dma.done %s869, 1024
        $region52: #{tpu_custom_call.1} parent=47 // pred_fallthru
          _
      $region48: #{tpu_custom_call.1} parent=5 // pred_fallthru
        _
    $region6: #{tpu_custom_call.1} parent=1 // loop_footer
      %s18 = sadd.s32 1, %s14
    $region7: #{tpu_custom_call.1} parent=1 // loop_footer_branch
      %13 = sbr.rel target = $region3
    $region8: #{tpu_custom_call.1} parent=1 // loop_exit
      _
    %874 = vsyncpa [#allocation4], 1
    %s875 = scalar_lea.sflag [#allocation4], 1
    %876 = vsyncpa %s875, 1

</llo_original>
